<compile_context>
chip_gen: v5e
topology: v5e:2x2
jax: 0.10.0
libtpu: 0.0.40
codegen_flags: <defaults>
</compile_context>

<pallas_src>
import functools

import numpy as np
import jax
import jax.numpy as jnp
from jax.experimental import pallas as pl
from jax.experimental.pallas import tpu as pltpu


# 3x3 depthwise taps, row-major: t = 3*(dy+1) + (dx+1).
_TAPS = tuple((dy, dx) for dy in (-1, 0, 1) for dx in (-1, 0, 1))
_CENTER = _TAPS.index((0, 0))
_GELU_C = float(np.sqrt(2.0 / np.pi))


# ---------------------------------------------------------------------------
# Pallas kernel: one batch element per grid step, everything fused.
# ---------------------------------------------------------------------------
def _marepvit_kernel(x_ref, mask_ref, wdw_ref, bdw_ref,
                     w1_ref, b1_ref, w2_ref, b2_ref, o_ref, *, H, W):
    # x_ref   : (1, C, H*W)   input, spatial flattened
    # mask_ref: (9, 1, H*W)   {0,1} validity mask per tap (zero-pad boundary)
    # wdw_ref : (9, C, 1)     folded depthwise tap weights (RepVGGDW + both BNs)
    # bdw_ref : (C, 1)        folded token-mixer bias
    # w1_ref  : (2C, C)       channel-mixer conv1 (BN folded)
    # b1_ref  : (2C, 1)
    # w2_ref  : (C, 2C)       channel-mixer conv2 (BN folded)
    # b2_ref  : (C, 1)
    # o_ref   : (1, C, H*W)
    hw = H * W
    x = x_ref[0]                                            # (C, H*W) f32

    # ---- token mixer: folded RepVGGDW as 9 shifted taps ---------------------
    acc = jnp.zeros_like(x)
    for t, (dy, dx) in enumerate(_TAPS):
        s = dy * W + dx                                     # flattened offset
        if s == 0:
            shifted = x
        else:
            # shifted[p] = x[(p + s) % hw]; wrap / row bleed is zeroed by mask.
            shifted = pltpu.roll(x, shift=(-s) % hw, axis=1)
        acc = acc + wdw_ref[t] * (mask_ref[t] * shifted)    # (C,1)*( (1,HW)*(C,HW) )
    token = acc + bdw_ref[...]                              # (C, H*W)

    # ---- channel mixer: 1x1 conv -> GELU(tanh approx) -> 1x1 conv -----------
    h = jnp.dot(w1_ref[...], token,
                preferred_element_type=jnp.float32) + b1_ref[...]
    h = 0.5 * h * (1.0 + jnp.tanh(_GELU_C * (h + 0.044715 * (h * h * h))))
    y = jnp.dot(w2_ref[...], h,
                preferred_element_type=jnp.float32) + b2_ref[...]

    # ---- residual ------------------------------------------------------------
    o_ref[0] = (x + y).astype(o_ref.dtype)


# ---------------------------------------------------------------------------
# Host-side glue.
# ---------------------------------------------------------------------------
def _tap_masks(h, w):
    m = np.zeros((len(_TAPS), 1, h * w), np.float32)
    ii, jj = np.meshgrid(np.arange(h), np.arange(w), indexing="ij")
    for t, (dy, dx) in enumerate(_TAPS):
        valid = ((ii + dy >= 0) & (ii + dy < h) &
                 (jj + dx >= 0) & (jj + dx < w))
        m[t, 0] = valid.reshape(-1).astype(np.float32)
    return m


def marepvit_block_forward(x, wdw, bdw, w1, b1, w2, b2):
    """x: (N, C, H, W) f32; wdw: (9, C); bdw: (C,); w1: (2C, C); w2: (C, 2C)."""
    n, c, h, w = x.shape
    hw = h * w
    hidden = w1.shape[0]
    ntaps = len(_TAPS)
    masks = jnp.asarray(_tap_masks(h, w))
    x_flat = x.reshape(n, c, hw)

    kernel = functools.partial(_marepvit_kernel, H=h, W=w)
    out_flat = pl.pallas_call(
        kernel,
        out_shape=jax.ShapeDtypeStruct((n, c, hw), x.dtype),
        grid_spec=pltpu.PrefetchScalarGridSpec(
            num_scalar_prefetch=0,
            grid=(n,),
            in_specs=[
                pl.BlockSpec((1, c, hw), lambda i: (i, 0, 0)),            # x
                pl.BlockSpec((ntaps, 1, hw), lambda i: (0, 0, 0)),        # masks
                pl.BlockSpec((ntaps, c, 1), lambda i: (0, 0, 0)),         # Wdw
                pl.BlockSpec((c, 1), lambda i: (0, 0)),                   # Bdw
                pl.BlockSpec((hidden, c), lambda i: (0, 0)),              # W1
                pl.BlockSpec((hidden, 1), lambda i: (0, 0)),              # b1
                pl.BlockSpec((c, hidden), lambda i: (0, 0)),              # W2
                pl.BlockSpec((c, 1), lambda i: (0, 0)),                   # b2
            ],
            out_specs=pl.BlockSpec((1, c, hw), lambda i: (i, 0, 0)),
        ),
        compiler_params=pltpu.CompilerParams(
            dimension_semantics=("parallel",)),
    )(x_flat, masks,
      wdw.reshape(ntaps, c, 1), bdw.reshape(c, 1),
      w1, b1.reshape(hidden, 1),
      w2, b2.reshape(c, 1))
    return out_flat.reshape(n, c, h, w)


def _bn_fold(gamma, beta, mean, var, eps=1e-5):
    scale = gamma / np.sqrt(var + eps)
    return scale, beta - mean * scale


class MARepViTBlock:
    """stride == 1 (identity) branch of the PyTorch MARepViTBlock, eval mode."""

    def __init__(self, inp, hidden_dim, oup, kernel_size, stride, use_se,
                 use_hs, key):
        assert stride == 1 and inp == oup and hidden_dim == 2 * inp
        assert kernel_size == 3
        assert not use_se          # TODO(synk): SqueezeExcite path not implemented.
        del use_hs                 # both branches of the PyTorch module use GELU
        c, hid = inp, hidden_dim
        ks = jax.random.split(key, 9)

        def u(k, shape, b):
            return np.asarray(jax.random.uniform(k, shape, jnp.float32, -b, b))

        def rand_bn(k, nchan):
            # BN affine / running stats randomized so the test is non-trivial;
            # the literal __init__ values (mean=0, var=1, gamma per
            # bn_weight_init, beta=0) are just a special case of this fold.
            k1, k2, k3, k4 = jax.random.split(k, 4)
            gamma = 0.5 + np.asarray(jax.random.uniform(k1, (nchan,), jnp.float32))
            beta = np.asarray(jax.random.normal(k2, (nchan,), jnp.float32)) * 0.2
            mean = np.asarray(jax.random.normal(k3, (nchan,), jnp.float32)) * 0.2
            var = 0.5 + np.asarray(jax.random.uniform(k4, (nchan,), jnp.float32))
            return gamma, beta, mean, var

        # Raw (PyTorch-equivalent) parameters.
        self.inp, self.hid = c, hid
        self.w3 = u(ks[0], (c, 3, 3), 1.0 / 3.0)        # 3x3 dw conv (no bias)
        self.bn1 = rand_bn(ks[1], c)                    # BN inside Conv2d_BN
        self.w1dw = u(ks[2], (c,), 1.0)                 # 1x1 dw conv weight
        self.b1dw = u(ks[3], (c,), 1.0)                 # 1x1 dw conv bias
        self.bn2 = rand_bn(ks[4], c)                    # RepVGGDW outer BN
        self.wc1 = u(ks[5], (hid, c), 1.0 / np.sqrt(c))     # channel mixer conv1
        self.bn3 = rand_bn(ks[6], hid)
        self.wc2 = u(ks[7], (c, hid), 1.0 / np.sqrt(hid))   # channel mixer conv2
        self.bn4 = rand_bn(ks[8], c)

        # ---- fold eval-mode BNs + RepVGGDW branches into 9 tap weights ------
        s1, o1 = _bn_fold(*self.bn1)
        s2, o2 = _bn_fold(*self.bn2)
        wdw = np.zeros((len(_TAPS), c), np.float32)          # (9, C)
        for t, (dy, dx) in enumerate(_TAPS):
            wdw[t, :] = s1 * self.w3[:, dy + 1, dx + 1]
        wdw[_CENTER, :] += self.w1dw + 1.0              # + 1x1 dw conv + identity
        wdw = wdw * s2[None, :]
        bdw = s2 * (o1 + self.b1dw) + o2

        s3, o3 = _bn_fold(*self.bn3)
        s4, o4 = _bn_fold(*self.bn4)
        w1 = s3[:, None] * self.wc1
        w2 = s4[:, None] * self.wc2

        self.folded = tuple(jnp.asarray(a, jnp.float32)
                            for a in (wdw, bdw, w1, o3, w2, o4))

    def __call__(self, x):
        return marepvit_block_forward(x, *self.folded)


# ---------------------------------------------------------------------------
# Pure-numpy reference of the PyTorch forward (raw, unfolded parameters).
# ---------------------------------------------------------------------------
def _ref_bn(x, gamma, beta, mean, var, eps=1e-5):
    g = (gamma / np.sqrt(var + eps))[None, :, None, None]
    return g * (x - mean[None, :, None, None]) + beta[None, :, None, None]


def _ref_forward(x, blk):
    n, c, h, w = x.shape
    xp = np.pad(x, ((0, 0), (0, 0), (1, 1), (1, 1)))
    conv3 = np.zeros_like(x)
    for dy in (-1, 0, 1):
        for dx in (-1, 0, 1):
            conv3 += (blk.w3[None, :, dy + 1, dx + 1, None, None]
                      * xp[:, :, 1 + dy:1 + dy + h, 1 + dx:1 + dx + w])
    t = (_ref_bn(conv3, *blk.bn1)
         + blk.w1dw[None, :, None, None] * x + blk.b1dw[None, :, None, None]
         + x)
    token = _ref_bn(t, *blk.bn2)
    h1 = _ref_bn(np.einsum('kc,nchw->nkhw', blk.wc1, token), *blk.bn3)
    g = 0.5 * h1 * (1.0 + np.tanh(_GELU_C * (h1 + 0.044715 * h1 ** 3)))
    h2 = _ref_bn(np.einsum('ck,nkhw->nchw', blk.wc2, g), *blk.bn4)
    return x + h2


if __name__ == "__main__":
    key = jax.random.PRNGKey(0)
    kx, kp = jax.random.split(key)

    N, C, H, W = 2, 8, 16, 16          # inp = oup = 8, hidden_dim = 16
    x = jax.random.normal(kx, (N, C, H, W), dtype=jnp.float32)

    blk = MARepViTBlock(inp=C, hidden_dim=2 * C, oup=C, kernel_size=3,
                        stride=1, use_se=False, use_hs=True, key=kp)

    out = jax.block_until_ready(blk(x))

    ref = _ref_forward(np.asarray(x), blk)
    ok = (out.shape == (N, C, H, W)
          and np.allclose(np.asarray(out), ref, rtol=5e-2, atol=5e-2))
    if ok:
        print("KERNEL_OK")
    else:
        err = float(np.max(np.abs(np.asarray(out) - ref)))
        print(f"MISMATCH max_abs_err={err}")
</pallas_src>

<mosaic_0001>
module attributes {stable_mosaic.version = 11 : i64} {
  func.func @_marepvit_kernel(%arg0: i32, %arg1: memref<1x8x256xf32, #tpu.memory_space<vmem>>, %arg2: memref<9x1x256xf32, #tpu.memory_space<vmem>>, %arg3: memref<9x8x1xf32, #tpu.memory_space<vmem>>, %arg4: memref<8x1xf32, #tpu.memory_space<vmem>>, %arg5: memref<16x8xf32, #tpu.memory_space<vmem>>, %arg6: memref<16x1xf32, #tpu.memory_space<vmem>>, %arg7: memref<8x16xf32, #tpu.memory_space<vmem>>, %arg8: memref<8x1xf32, #tpu.memory_space<vmem>>, %arg9: memref<1x8x256xf32, #tpu.memory_space<vmem>>) attributes {dimension_semantics = [#tpu.dimension_semantics<parallel>], iteration_bounds = array<i64: 2>, scalar_prefetch = 0 : i64, scratch_operands = 0 : i64, tpu.core_type = #tpu.core_type<tc>, window_params = [{transform_indices = @transform_0, window_bounds = array<i64: 1, 8, 256>}, {pipeline_mode = #tpu.pipeline_mode<synchronous>, transform_indices = @transform_1, window_bounds = array<i64: 9, 1, 256>}, {pipeline_mode = #tpu.pipeline_mode<synchronous>, transform_indices = @transform_2, window_bounds = array<i64: 9, 8, 1>}, {pipeline_mode = #tpu.pipeline_mode<synchronous>, transform_indices = @transform_3, window_bounds = array<i64: 8, 1>}, {pipeline_mode = #tpu.pipeline_mode<synchronous>, transform_indices = @transform_4, window_bounds = array<i64: 16, 8>}, {pipeline_mode = #tpu.pipeline_mode<synchronous>, transform_indices = @transform_5, window_bounds = array<i64: 16, 1>}, {pipeline_mode = #tpu.pipeline_mode<synchronous>, transform_indices = @transform_6, window_bounds = array<i64: 8, 16>}, {pipeline_mode = #tpu.pipeline_mode<synchronous>, transform_indices = @transform_7, window_bounds = array<i64: 8, 1>}, {transform_indices = @transform_8, window_bounds = array<i64: 1, 8, 256>}]} {
    %c0 = arith.constant 0 : index
    %c0_0 = arith.constant 0 : index
    %c0_1 = arith.constant 0 : index
    %0 = vector.load %arg1[%c0, %c0_0, %c0_1] : memref<1x8x256xf32, #tpu.memory_space<vmem>>, vector<1x8x256xf32>
    %1 = vector.shape_cast %0 : vector<1x8x256xf32> to vector<8x256xf32>
    %cst = arith.constant 0.000000e+00 : f32
    %2 = vector.broadcast %cst : f32 to vector<8x256xf32>
    %c17_i32 = arith.constant 17 : i32
    %3 = tpu.dynamic_rotate %1 by %c17_i32 dim 1 : vector<8x256xf32>, i32 -> vector<8x256xf32>
    %c0_2 = arith.constant 0 : index
    %c0_3 = arith.constant 0 : index
    %c0_4 = arith.constant 0 : index
    %4 = vector.load %arg3[%c0_2, %c0_3, %c0_4] : memref<9x8x1xf32, #tpu.memory_space<vmem>>, vector<1x8x1xf32>
    %5 = vector.shape_cast %4 : vector<1x8x1xf32> to vector<8x1xf32>
    %c0_5 = arith.constant 0 : index
    %c0_6 = arith.constant 0 : index
    %c0_7 = arith.constant 0 : index
    %6 = vector.load %arg2[%c0_5, %c0_6, %c0_7] : memref<9x1x256xf32, #tpu.memory_space<vmem>>, vector<1x1x256xf32>
    %7 = vector.shape_cast %6 : vector<1x1x256xf32> to vector<1x256xf32>
    %8 = vector.broadcast %7 : vector<1x256xf32> to vector<8x256xf32>
    %9 = arith.mulf %8, %3 : vector<8x256xf32>
    %10 = vector.broadcast %5 : vector<8x1xf32> to vector<8x256xf32>
    %11 = arith.mulf %10, %9 : vector<8x256xf32>
    %12 = arith.addf %2, %11 : vector<8x256xf32>
    %c16_i32 = arith.constant 16 : i32
    %13 = tpu.dynamic_rotate %1 by %c16_i32 dim 1 : vector<8x256xf32>, i32 -> vector<8x256xf32>
    %c1 = arith.constant 1 : index
    %c0_8 = arith.constant 0 : index
    %c0_9 = arith.constant 0 : index
    %14 = vector.load %arg3[%c1, %c0_8, %c0_9] : memref<9x8x1xf32, #tpu.memory_space<vmem>>, vector<1x8x1xf32>
    %15 = vector.shape_cast %14 : vector<1x8x1xf32> to vector<8x1xf32>
    %c1_10 = arith.constant 1 : index
    %c0_11 = arith.constant 0 : index
    %c0_12 = arith.constant 0 : index
    %16 = vector.load %arg2[%c1_10, %c0_11, %c0_12] : memref<9x1x256xf32, #tpu.memory_space<vmem>>, vector<1x1x256xf32>
    %17 = vector.shape_cast %16 : vector<1x1x256xf32> to vector<1x256xf32>
    %18 = vector.broadcast %17 : vector<1x256xf32> to vector<8x256xf32>
    %19 = arith.mulf %18, %13 : vector<8x256xf32>
    %20 = vector.broadcast %15 : vector<8x1xf32> to vector<8x256xf32>
    %21 = arith.mulf %20, %19 : vector<8x256xf32>
    %22 = arith.addf %12, %21 : vector<8x256xf32>
    %c15_i32 = arith.constant 15 : i32
    %23 = tpu.dynamic_rotate %1 by %c15_i32 dim 1 : vector<8x256xf32>, i32 -> vector<8x256xf32>
    %c2 = arith.constant 2 : index
    %c0_13 = arith.constant 0 : index
    %c0_14 = arith.constant 0 : index
    %24 = vector.load %arg3[%c2, %c0_13, %c0_14] : memref<9x8x1xf32, #tpu.memory_space<vmem>>, vector<1x8x1xf32>
    %25 = vector.shape_cast %24 : vector<1x8x1xf32> to vector<8x1xf32>
    %c2_15 = arith.constant 2 : index
    %c0_16 = arith.constant 0 : index
    %c0_17 = arith.constant 0 : index
    %26 = vector.load %arg2[%c2_15, %c0_16, %c0_17] : memref<9x1x256xf32, #tpu.memory_space<vmem>>, vector<1x1x256xf32>
    %27 = vector.shape_cast %26 : vector<1x1x256xf32> to vector<1x256xf32>
    %28 = vector.broadcast %27 : vector<1x256xf32> to vector<8x256xf32>
    %29 = arith.mulf %28, %23 : vector<8x256xf32>
    %30 = vector.broadcast %25 : vector<8x1xf32> to vector<8x256xf32>
    %31 = arith.mulf %30, %29 : vector<8x256xf32>
    %32 = arith.addf %22, %31 : vector<8x256xf32>
    %c1_i32 = arith.constant 1 : i32
    %33 = tpu.dynamic_rotate %1 by %c1_i32 dim 1 : vector<8x256xf32>, i32 -> vector<8x256xf32>
    %c3 = arith.constant 3 : index
    %c0_18 = arith.constant 0 : index
    %c0_19 = arith.constant 0 : index
    %34 = vector.load %arg3[%c3, %c0_18, %c0_19] : memref<9x8x1xf32, #tpu.memory_space<vmem>>, vector<1x8x1xf32>
    %35 = vector.shape_cast %34 : vector<1x8x1xf32> to vector<8x1xf32>
    %c3_20 = arith.constant 3 : index
    %c0_21 = arith.constant 0 : index
    %c0_22 = arith.constant 0 : index
    %36 = vector.load %arg2[%c3_20, %c0_21, %c0_22] : memref<9x1x256xf32, #tpu.memory_space<vmem>>, vector<1x1x256xf32>
    %37 = vector.shape_cast %36 : vector<1x1x256xf32> to vector<1x256xf32>
    %38 = vector.broadcast %37 : vector<1x256xf32> to vector<8x256xf32>
    %39 = arith.mulf %38, %33 : vector<8x256xf32>
    %40 = vector.broadcast %35 : vector<8x1xf32> to vector<8x256xf32>
    %41 = arith.mulf %40, %39 : vector<8x256xf32>
    %42 = arith.addf %32, %41 : vector<8x256xf32>
    %c4 = arith.constant 4 : index
    %c0_23 = arith.constant 0 : index
    %c0_24 = arith.constant 0 : index
    %43 = vector.load %arg3[%c4, %c0_23, %c0_24] : memref<9x8x1xf32, #tpu.memory_space<vmem>>, vector<1x8x1xf32>
    %44 = vector.shape_cast %43 : vector<1x8x1xf32> to vector<8x1xf32>
    %c4_25 = arith.constant 4 : index
    %c0_26 = arith.constant 0 : index
    %c0_27 = arith.constant 0 : index
    %45 = vector.load %arg2[%c4_25, %c0_26, %c0_27] : memref<9x1x256xf32, #tpu.memory_space<vmem>>, vector<1x1x256xf32>
    %46 = vector.shape_cast %45 : vector<1x1x256xf32> to vector<1x256xf32>
    %47 = vector.broadcast %46 : vector<1x256xf32> to vector<8x256xf32>
    %48 = arith.mulf %47, %1 : vector<8x256xf32>
    %49 = vector.broadcast %44 : vector<8x1xf32> to vector<8x256xf32>
    %50 = arith.mulf %49, %48 : vector<8x256xf32>
    %51 = arith.addf %42, %50 : vector<8x256xf32>
    %c255_i32 = arith.constant 255 : i32
    %52 = tpu.dynamic_rotate %1 by %c255_i32 dim 1 : vector<8x256xf32>, i32 -> vector<8x256xf32>
    %c5 = arith.constant 5 : index
    %c0_28 = arith.constant 0 : index
    %c0_29 = arith.constant 0 : index
    %53 = vector.load %arg3[%c5, %c0_28, %c0_29] : memref<9x8x1xf32, #tpu.memory_space<vmem>>, vector<1x8x1xf32>
    %54 = vector.shape_cast %53 : vector<1x8x1xf32> to vector<8x1xf32>
    %c5_30 = arith.constant 5 : index
    %c0_31 = arith.constant 0 : index
    %c0_32 = arith.constant 0 : index
    %55 = vector.load %arg2[%c5_30, %c0_31, %c0_32] : memref<9x1x256xf32, #tpu.memory_space<vmem>>, vector<1x1x256xf32>
    %56 = vector.shape_cast %55 : vector<1x1x256xf32> to vector<1x256xf32>
    %57 = vector.broadcast %56 : vector<1x256xf32> to vector<8x256xf32>
    %58 = arith.mulf %57, %52 : vector<8x256xf32>
    %59 = vector.broadcast %54 : vector<8x1xf32> to vector<8x256xf32>
    %60 = arith.mulf %59, %58 : vector<8x256xf32>
    %61 = arith.addf %51, %60 : vector<8x256xf32>
    %c241_i32 = arith.constant 241 : i32
    %62 = tpu.dynamic_rotate %1 by %c241_i32 dim 1 : vector<8x256xf32>, i32 -> vector<8x256xf32>
    %c6 = arith.constant 6 : index
    %c0_33 = arith.constant 0 : index
    %c0_34 = arith.constant 0 : index
    %63 = vector.load %arg3[%c6, %c0_33, %c0_34] : memref<9x8x1xf32, #tpu.memory_space<vmem>>, vector<1x8x1xf32>
    %64 = vector.shape_cast %63 : vector<1x8x1xf32> to vector<8x1xf32>
    %c6_35 = arith.constant 6 : index
    %c0_36 = arith.constant 0 : index
    %c0_37 = arith.constant 0 : index
    %65 = vector.load %arg2[%c6_35, %c0_36, %c0_37] : memref<9x1x256xf32, #tpu.memory_space<vmem>>, vector<1x1x256xf32>
    %66 = vector.shape_cast %65 : vector<1x1x256xf32> to vector<1x256xf32>
    %67 = vector.broadcast %66 : vector<1x256xf32> to vector<8x256xf32>
    %68 = arith.mulf %67, %62 : vector<8x256xf32>
    %69 = vector.broadcast %64 : vector<8x1xf32> to vector<8x256xf32>
    %70 = arith.mulf %69, %68 : vector<8x256xf32>
    %71 = arith.addf %61, %70 : vector<8x256xf32>
    %c240_i32 = arith.constant 240 : i32
    %72 = tpu.dynamic_rotate %1 by %c240_i32 dim 1 : vector<8x256xf32>, i32 -> vector<8x256xf32>
    %c7 = arith.constant 7 : index
    %c0_38 = arith.constant 0 : index
    %c0_39 = arith.constant 0 : index
    %73 = vector.load %arg3[%c7, %c0_38, %c0_39] : memref<9x8x1xf32, #tpu.memory_space<vmem>>, vector<1x8x1xf32>
    %74 = vector.shape_cast %73 : vector<1x8x1xf32> to vector<8x1xf32>
    %c7_40 = arith.constant 7 : index
    %c0_41 = arith.constant 0 : index
    %c0_42 = arith.constant 0 : index
    %75 = vector.load %arg2[%c7_40, %c0_41, %c0_42] : memref<9x1x256xf32, #tpu.memory_space<vmem>>, vector<1x1x256xf32>
    %76 = vector.shape_cast %75 : vector<1x1x256xf32> to vector<1x256xf32>
    %77 = vector.broadcast %76 : vector<1x256xf32> to vector<8x256xf32>
    %78 = arith.mulf %77, %72 : vector<8x256xf32>
    %79 = vector.broadcast %74 : vector<8x1xf32> to vector<8x256xf32>
    %80 = arith.mulf %79, %78 : vector<8x256xf32>
    %81 = arith.addf %71, %80 : vector<8x256xf32>
    %c239_i32 = arith.constant 239 : i32
    %82 = tpu.dynamic_rotate %1 by %c239_i32 dim 1 : vector<8x256xf32>, i32 -> vector<8x256xf32>
    %c8 = arith.constant 8 : index
    %c0_43 = arith.constant 0 : index
    %c0_44 = arith.constant 0 : index
    %83 = vector.load %arg3[%c8, %c0_43, %c0_44] : memref<9x8x1xf32, #tpu.memory_space<vmem>>, vector<1x8x1xf32>
    %84 = vector.shape_cast %83 : vector<1x8x1xf32> to vector<8x1xf32>
    %c8_45 = arith.constant 8 : index
    %c0_46 = arith.constant 0 : index
    %c0_47 = arith.constant 0 : index
    %85 = vector.load %arg2[%c8_45, %c0_46, %c0_47] : memref<9x1x256xf32, #tpu.memory_space<vmem>>, vector<1x1x256xf32>
    %86 = vector.shape_cast %85 : vector<1x1x256xf32> to vector<1x256xf32>
    %87 = vector.broadcast %86 : vector<1x256xf32> to vector<8x256xf32>
    %88 = arith.mulf %87, %82 : vector<8x256xf32>
    %89 = vector.broadcast %84 : vector<8x1xf32> to vector<8x256xf32>
    %90 = arith.mulf %89, %88 : vector<8x256xf32>
    %91 = arith.addf %81, %90 : vector<8x256xf32>
    %c0_48 = arith.constant 0 : index
    %c0_49 = arith.constant 0 : index
    %92 = vector.load %arg4[%c0_48, %c0_49] : memref<8x1xf32, #tpu.memory_space<vmem>>, vector<8x1xf32>
    %93 = vector.broadcast %92 : vector<8x1xf32> to vector<8x256xf32>
    %94 = arith.addf %91, %93 : vector<8x256xf32>
    %c0_50 = arith.constant 0 : index
    %c0_51 = arith.constant 0 : index
    %95 = vector.load %arg5[%c0_50, %c0_51] : memref<16x8xf32, #tpu.memory_space<vmem>>, vector<16x8xf32>
    %cst_52 = arith.constant dense<0.000000e+00> : vector<16x256xf32>
    %96 = tpu.matmul %95, %94, %cst_52 {dimension_numbers = #tpu.dot_dimension_numbers<[1], [0], [0], [1], [0, 0, 1, 1], [], []>} : vector<16x8xf32>, vector<8x256xf32>, vector<16x256xf32> -> vector<16x256xf32>
    %c0_53 = arith.constant 0 : index
    %c0_54 = arith.constant 0 : index
    %97 = vector.load %arg6[%c0_53, %c0_54] : memref<16x1xf32, #tpu.memory_space<vmem>>, vector<16x1xf32>
    %98 = vector.broadcast %97 : vector<16x1xf32> to vector<16x256xf32>
    %99 = arith.addf %96, %98 : vector<16x256xf32>
    %cst_55 = arith.constant 5.000000e-01 : f32
    %100 = vector.broadcast %cst_55 : f32 to vector<16x256xf32>
    %101 = arith.mulf %100, %99 : vector<16x256xf32>
    %102 = arith.mulf %99, %99 : vector<16x256xf32>
    %103 = arith.mulf %102, %99 : vector<16x256xf32>
    %cst_56 = arith.constant 4.471500e-02 : f32
    %104 = vector.broadcast %cst_56 : f32 to vector<16x256xf32>
    %105 = arith.mulf %104, %103 : vector<16x256xf32>
    %106 = arith.addf %99, %105 : vector<16x256xf32>
    %cst_57 = arith.constant 0.797884583 : f32
    %107 = vector.broadcast %cst_57 : f32 to vector<16x256xf32>
    %108 = arith.mulf %107, %106 : vector<16x256xf32>
    %109 = math.tanh %108 : vector<16x256xf32>
    %cst_58 = arith.constant 1.000000e+00 : f32
    %110 = vector.broadcast %cst_58 : f32 to vector<16x256xf32>
    %111 = arith.addf %110, %109 : vector<16x256xf32>
    %112 = arith.mulf %101, %111 : vector<16x256xf32>
    %c0_59 = arith.constant 0 : index
    %c0_60 = arith.constant 0 : index
    %113 = vector.load %arg7[%c0_59, %c0_60] : memref<8x16xf32, #tpu.memory_space<vmem>>, vector<8x16xf32>
    %cst_61 = arith.constant dense<0.000000e+00> : vector<8x256xf32>
    %114 = tpu.matmul %113, %112, %cst_61 {dimension_numbers = #tpu.dot_dimension_numbers<[1], [0], [0], [1], [0, 0, 1, 1], [], []>} : vector<8x16xf32>, vector<16x256xf32>, vector<8x256xf32> -> vector<8x256xf32>
    %c0_62 = arith.constant 0 : index
    %c0_63 = arith.constant 0 : index
    %115 = vector.load %arg8[%c0_62, %c0_63] : memref<8x1xf32, #tpu.memory_space<vmem>>, vector<8x1xf32>
    %116 = vector.broadcast %115 : vector<8x1xf32> to vector<8x256xf32>
    %117 = arith.addf %114, %116 : vector<8x256xf32>
    %118 = arith.addf %1, %117 : vector<8x256xf32>
    %c0_64 = arith.constant 0 : index
    %c0_65 = arith.constant 0 : index
    %c0_66 = arith.constant 0 : index
    %119 = vector.load %arg9[%c0_64, %c0_65, %c0_66] : memref<1x8x256xf32, #tpu.memory_space<vmem>>, vector<1x8x256xf32>
    %120 = vector.shape_cast %119 : vector<1x8x256xf32> to vector<8x256xf32>
    %121 = vector.shape_cast %118 : vector<8x256xf32> to vector<1x8x256xf32>
    tpu.vector_store %arg9[%c0_64, %c0_65, %c0_66], %121 {strides = array<i32>} : memref<1x8x256xf32, #tpu.memory_space<vmem>>, vector<1x8x256xf32>,
    return
  }
  func.func @transform_0(%arg0: i32) -> (i32, i32, i32) {
    %c0_i32 = arith.constant 0 : i32
    %c0_i32_0 = arith.constant 0 : i32
    %c0_i32_1 = arith.constant 0 : i32
    return %arg0, %c0_i32, %c0_i32_0 : i32, i32, i32
  }
  func.func @transform_1(%arg0: i32) -> (i32, i32, i32) {
    %c0_i32 = arith.constant 0 : i32
    %c0_i32_0 = arith.constant 0 : i32
    %c0_i32_1 = arith.constant 0 : i32
    %c0_i32_2 = arith.constant 0 : i32
    return %c0_i32, %c0_i32_0, %c0_i32_1 : i32, i32, i32
  }
  func.func @transform_2(%arg0: i32) -> (i32, i32, i32) {
    %c0_i32 = arith.constant 0 : i32
    %c0_i32_0 = arith.constant 0 : i32
    %c0_i32_1 = arith.constant 0 : i32
    %c0_i32_2 = arith.constant 0 : i32
    return %c0_i32, %c0_i32_0, %c0_i32_1 : i32, i32, i32
  }
  func.func @transform_3(%arg0: i32) -> (i32, i32) {
    %c0_i32 = arith.constant 0 : i32
    %c0_i32_0 = arith.constant 0 : i32
    %c0_i32_1 = arith.constant 0 : i32
    return %c0_i32, %c0_i32_0 : i32, i32
  }
  func.func @transform_4(%arg0: i32) -> (i32, i32) {
    %c0_i32 = arith.constant 0 : i32
    %c0_i32_0 = arith.constant 0 : i32
    %c0_i32_1 = arith.constant 0 : i32
    return %c0_i32, %c0_i32_0 : i32, i32
  }
  func.func @transform_5(%arg0: i32) -> (i32, i32) {
    %c0_i32 = arith.constant 0 : i32
    %c0_i32_0 = arith.constant 0 : i32
    %c0_i32_1 = arith.constant 0 : i32
    return %c0_i32, %c0_i32_0 : i32, i32
  }
  func.func @transform_6(%arg0: i32) -> (i32, i32) {
    %c0_i32 = arith.constant 0 : i32
    %c0_i32_0 = arith.constant 0 : i32
    %c0_i32_1 = arith.constant 0 : i32
    return %c0_i32, %c0_i32_0 : i32, i32
  }
  func.func @transform_7(%arg0: i32) -> (i32, i32) {
    %c0_i32 = arith.constant 0 : i32
    %c0_i32_0 = arith.constant 0 : i32
    %c0_i32_1 = arith.constant 0 : i32
    return %c0_i32, %c0_i32_0 : i32, i32
  }
  func.func @transform_8(%arg0: i32) -> (i32, i32, i32) {
    %c0_i32 = arith.constant 0 : i32
    %c0_i32_0 = arith.constant 0 : i32
    %c0_i32_1 = arith.constant 0 : i32
    return %arg0, %c0_i32, %c0_i32_0 : i32, i32, i32
  }
}

</mosaic_0001>

<llo_original>
// kernel: tpu_custom_call.1
$region0: #{tpu_custom_call.1}
  #allocation0 [shape = 'u32[]', space=smem, size = 0x4, offset = 0x4, fixed_abs, tag = 'smem constant byte address 0x4 - core index']
  #allocation1 [shape = 'u32[72,128]{1,0:T(1,128)}', space=vmem, size = 0x9000, scoped, tag = 'internal scratch']
  %s0 = inlined_call_operand.vmem [shape: f32[2,8,256], index: 0, kind: input, shape index: {}]
  %s1 = inlined_call_operand.vmem [shape: f32[9,1,256], index: 1, kind: input, shape index: {}]
  %s2 = inlined_call_operand.vmem [shape: f32[9,8,1], index: 2, kind: input, shape index: {}]
  %s3 = inlined_call_operand.vmem [shape: f32[8,1], index: 3, kind: input, shape index: {}]
  %s4 = inlined_call_operand.vmem [shape: f32[16,8], index: 4, kind: input, shape index: {}]
  %s5 = inlined_call_operand.vmem [shape: f32[16,1], index: 5, kind: input, shape index: {}]
  %s6 = inlined_call_operand.vmem [shape: f32[8,16], index: 6, kind: input, shape index: {}]
  %s7 = inlined_call_operand.vmem [shape: f32[8,1], index: 7, kind: input, shape index: {}]
  %s8 = inlined_call_operand.hbm [shape: f32[2,8,256], index: 8, kind: output, shape index: {}]
  %s9 = sld [smem:[#allocation0]]
  $region65: #{tpu_custom_call.1} parent=0
    _
  %s11 = ssub.s32 1, %s9
  %s12 = scalar_select 0, %s11, %s9
  $region1: #{tpu_custom_call.1} parent=0
    #allocation2 [shape = 'u8[16384]{0}', space=vmem, size = 0x4000, scoped, tag = 'output window, operand 0']
    #allocation3 [shape = 's32[2]{0}', space=sflag, size = 0x8, scoped, tag = 'scoped memory for tpu_custom_call.1']
    %13 = vsyncpa [#allocation3], 0
    %s14 = scalar_lea.sflag [#allocation3], 1
    %15 = vsyncpa %s14, 0
    loop: start=0, step=1, limit=4
    $region2: #{tpu_custom_call.1} parent=1 // loop_pre_header
      _
    $region3: #{tpu_custom_call.1} parent=1 // loop_header
      %s17 = sphi 0, %s21
      %p18 = scmp.ge.s32.totalorder %s17, 4
      %s27 = sphi 0, %s29
      %s30 = sphi 0, %s27
      %s31 = sphi 0, %s30
      %s47 = sphi 0, %s31
      %s51 = sphi 0, %s51
      %s53 = sphi 0, %s51
      %s54 = sphi 0, %s53
      %s68 = sphi 0, %s54
      %s72 = sphi 0, %s72
      %s74 = sphi 0, %s72
      %s75 = sphi 0, %s74
      %s89 = sphi 0, %s75
      %s93 = sphi 0, %s93
      %s95 = sphi 0, %s93
      %s96 = sphi 0, %s95
      %s110 = sphi 0, %s96
      %s114 = sphi 0, %s114
      %s116 = sphi 0, %s114
      %s117 = sphi 0, %s116
      %s131 = sphi 0, %s117
      %s135 = sphi 0, %s135
      %s137 = sphi 0, %s135
      %s138 = sphi 0, %s137
      %s152 = sphi 0, %s138
      %s156 = sphi 0, %s156
      %s158 = sphi 0, %s156
      %s159 = sphi 0, %s158
      %s173 = sphi 0, %s159
      %s177 = sphi 0, %s177
      %s179 = sphi 0, %s177
      %s180 = sphi 0, %s179
      %s194 = sphi 0, %s180
      %s200 = sphi 0, %s202
      %s203 = sphi 0, %s200
      %s204 = sphi 0, %s203
      %s220 = sphi 0, %s204
    $region4: #{tpu_custom_call.1} parent=1 // loop_header_branch
      %20 = sbr.rel (%p18) target = $region8
    $region5: #{tpu_custom_call.1} parent=1 // loop_body
      %s22 = ssub.s32 %s17, 1
      %s23 = ssub.s32 %s17, 2
      %s24 = sadd.s32 %s17, 1
      %s25 = ssub.s32 %s17, %s24
      %p26 = scmp.eq.s32.totalorder %s25, 0
      %s28 = sadd.s32 %s27, 1
      %s29 = scalar_select %p26, %s27, %s28
      %p32 = pneg %p26
      %p33 = scmp.eq.s32.totalorder %s17, 1
      %p34 = por %p32, %p33
      %p35 = scmp.ne.s32.totalorder %s27, %s30
      %p36 = scmp.eq.s32.totalorder %s17, 0
      %p37 = por %p35, %p36
      %p38 = scmp.ne.s32.totalorder %s27, %s30
      %p39 = scmp.eq.s32.totalorder %s22, 1
      %p40 = por %p38, %p39
      %p41 = scmp.ne.s32.totalorder %s30, %s31
      %p42 = scmp.eq.s32.totalorder %s22, 0
      %p43 = por %p41, %p42
      %p44 = scmp.ne.s32.totalorder %s30, %s31
      %p45 = scmp.eq.s32.totalorder %s23, 1
      %p46 = por %p44, %p45
      %p48 = scmp.ne.s32.totalorder %s31, %s47
      %p49 = scmp.eq.s32.totalorder %s23, 0
      %p50 = por %p48, %p49
      %s52 = sadd.s32 %s51, 1
      %p55 = scmp.eq.s32.totalorder %s17, 1
      %p56 = scmp.ne.s32.totalorder %s51, %s53
      %p57 = scmp.eq.s32.totalorder %s17, 0
      %p58 = por %p56, %p57
      %p59 = scmp.ne.s32.totalorder %s51, %s53
      %p60 = scmp.eq.s32.totalorder %s22, 1
      %p61 = por %p59, %p60
      %p62 = scmp.ne.s32.totalorder %s53, %s54
      %p63 = scmp.eq.s32.totalorder %s22, 0
      %p64 = por %p62, %p63
      %p65 = scmp.ne.s32.totalorder %s53, %s54
      %p66 = scmp.eq.s32.totalorder %s23, 1
      %p67 = por %p65, %p66
      %p69 = scmp.ne.s32.totalorder %s54, %s68
      %p70 = scmp.eq.s32.totalorder %s23, 0
      %p71 = por %p69, %p70
      %s73 = sadd.s32 %s72, 1
      %p76 = scmp.eq.s32.totalorder %s17, 1
      %p77 = scmp.ne.s32.totalorder %s72, %s74
      %p78 = scmp.eq.s32.totalorder %s17, 0
      %p79 = por %p77, %p78
      %p80 = scmp.ne.s32.totalorder %s72, %s74
      %p81 = scmp.eq.s32.totalorder %s22, 1
      %p82 = por %p80, %p81
      %p83 = scmp.ne.s32.totalorder %s74, %s75
      %p84 = scmp.eq.s32.totalorder %s22, 0
      %p85 = por %p83, %p84
      %p86 = scmp.ne.s32.totalorder %s74, %s75
      %p87 = scmp.eq.s32.totalorder %s23, 1
      %p88 = por %p86, %p87
      %p90 = scmp.ne.s32.totalorder %s75, %s89
      %p91 = scmp.eq.s32.totalorder %s23, 0
      %p92 = por %p90, %p91
      %s94 = sadd.s32 %s93, 1
      %p97 = scmp.eq.s32.totalorder %s17, 1
      %p98 = scmp.ne.s32.totalorder %s93, %s95
      %p99 = scmp.eq.s32.totalorder %s17, 0
      %p100 = por %p98, %p99
      %p101 = scmp.ne.s32.totalorder %s93, %s95
      %p102 = scmp.eq.s32.totalorder %s22, 1
      %p103 = por %p101, %p102
      %p104 = scmp.ne.s32.totalorder %s95, %s96
      %p105 = scmp.eq.s32.totalorder %s22, 0
      %p106 = por %p104, %p105
      %p107 = scmp.ne.s32.totalorder %s95, %s96
      %p108 = scmp.eq.s32.totalorder %s23, 1
      %p109 = por %p107, %p108
      %p111 = scmp.ne.s32.totalorder %s96, %s110
      %p112 = scmp.eq.s32.totalorder %s23, 0
      %p113 = por %p111, %p112
      %s115 = sadd.s32 %s114, 1
      %p118 = scmp.eq.s32.totalorder %s17, 1
      %p119 = scmp.ne.s32.totalorder %s114, %s116
      %p120 = scmp.eq.s32.totalorder %s17, 0
      %p121 = por %p119, %p120
      %p122 = scmp.ne.s32.totalorder %s114, %s116
      %p123 = scmp.eq.s32.totalorder %s22, 1
      %p124 = por %p122, %p123
      %p125 = scmp.ne.s32.totalorder %s116, %s117
      %p126 = scmp.eq.s32.totalorder %s22, 0
      %p127 = por %p125, %p126
      %p128 = scmp.ne.s32.totalorder %s116, %s117
      %p129 = scmp.eq.s32.totalorder %s23, 1
      %p130 = por %p128, %p129
      %p132 = scmp.ne.s32.totalorder %s117, %s131
      %p133 = scmp.eq.s32.totalorder %s23, 0
      %p134 = por %p132, %p133
      %s136 = sadd.s32 %s135, 1
      %p139 = scmp.eq.s32.totalorder %s17, 1
      %p140 = scmp.ne.s32.totalorder %s135, %s137
      %p141 = scmp.eq.s32.totalorder %s17, 0
      %p142 = por %p140, %p141
      %p143 = scmp.ne.s32.totalorder %s135, %s137
      %p144 = scmp.eq.s32.totalorder %s22, 1
      %p145 = por %p143, %p144
      %p146 = scmp.ne.s32.totalorder %s137, %s138
      %p147 = scmp.eq.s32.totalorder %s22, 0
      %p148 = por %p146, %p147
      %p149 = scmp.ne.s32.totalorder %s137, %s138
      %p150 = scmp.eq.s32.totalorder %s23, 1
      %p151 = por %p149, %p150
      %p153 = scmp.ne.s32.totalorder %s138, %s152
      %p154 = scmp.eq.s32.totalorder %s23, 0
      %p155 = por %p153, %p154
      %s157 = sadd.s32 %s156, 1
      %p160 = scmp.eq.s32.totalorder %s17, 1
      %p161 = scmp.ne.s32.totalorder %s156, %s158
      %p162 = scmp.eq.s32.totalorder %s17, 0
      %p163 = por %p161, %p162
      %p164 = scmp.ne.s32.totalorder %s156, %s158
      %p165 = scmp.eq.s32.totalorder %s22, 1
      %p166 = por %p164, %p165
      %p167 = scmp.ne.s32.totalorder %s158, %s159
      %p168 = scmp.eq.s32.totalorder %s22, 0
      %p169 = por %p167, %p168
      %p170 = scmp.ne.s32.totalorder %s158, %s159
      %p171 = scmp.eq.s32.totalorder %s23, 1
      %p172 = por %p170, %p171
      %p174 = scmp.ne.s32.totalorder %s159, %s173
      %p175 = scmp.eq.s32.totalorder %s23, 0
      %p176 = por %p174, %p175
      %s178 = sadd.s32 %s177, 1
      %p181 = scmp.eq.s32.totalorder %s17, 1
      %p182 = scmp.ne.s32.totalorder %s177, %s179
      %p183 = scmp.eq.s32.totalorder %s17, 0
      %p184 = por %p182, %p183
      %p185 = scmp.ne.s32.totalorder %s177, %s179
      %p186 = scmp.eq.s32.totalorder %s22, 1
      %p187 = por %p185, %p186
      %p188 = scmp.ne.s32.totalorder %s179, %s180
      %p189 = scmp.eq.s32.totalorder %s22, 0
      %p190 = por %p188, %p189
      %p191 = scmp.ne.s32.totalorder %s179, %s180
      %p192 = scmp.eq.s32.totalorder %s23, 1
      %p193 = por %p191, %p192
      %p195 = scmp.ne.s32.totalorder %s180, %s194
      %p196 = scmp.eq.s32.totalorder %s23, 0
      %p197 = por %p195, %p196
      %s198 = ssub.s32 %s17, %s24
      %p199 = scmp.eq.s32.totalorder %s198, 0
      %s201 = sadd.s32 %s200, 1
      %s202 = scalar_select %p199, %s200, %s201
      %p205 = pneg %p199
      %p206 = scmp.eq.s32.totalorder %s17, 1
      %p207 = por %p205, %p206
      %p208 = scmp.ne.s32.totalorder %s200, %s203
      %p209 = scmp.eq.s32.totalorder %s17, 0
      %p210 = por %p208, %p209
      %p211 = scmp.ne.s32.totalorder %s200, %s203
      %p212 = scmp.eq.s32.totalorder %s22, 1
      %p213 = por %p211, %p212
      %p214 = scmp.ne.s32.totalorder %s203, %s204
      %p215 = scmp.eq.s32.totalorder %s22, 0
      %p216 = por %p214, %p215
      %p217 = scmp.ne.s32.totalorder %s203, %s204
      %p218 = scmp.eq.s32.totalorder %s23, 1
      %p219 = por %p217, %p218
      %p221 = scmp.ne.s32.totalorder %s204, %s220
      %p222 = scmp.eq.s32.totalorder %s23, 0
      %p223 = por %p221, %p222
      %p224 = scmp.le.s32.totalorder 1, %s17
      %p225 = scmp.lt.s32.totalorder %s17, 3
      %p226 = pnand %p224, %p225
      %p227 = pneg %p226
      // Predicated region
      $region9: #{tpu_custom_call.1} parent=5 // pred_check
        _
      $region10: #{tpu_custom_call.1} parent=5 // pred_check_branch
        %229 = sbr.rel (%p226) target = $region12
      $region11: #{tpu_custom_call.1} parent=5 // pred_region
        %s230 = ssub.s32 %s17, 1
        // Predicated region
        $region13: #{tpu_custom_call.1} parent=11 // pred_check
          %p231 = pneg %p64
        $region14: #{tpu_custom_call.1} parent=11 // pred_check_branch
          %233 = sbr.rel (%p231) target = $region16
        $region15: #{tpu_custom_call.1} parent=11 // pred_region
          _
        $region16: #{tpu_custom_call.1} parent=11 // pred_fallthru
          _
        // Predicated region
        $region17: #{tpu_custom_call.1} parent=11 // pred_check
          %p234 = pneg %p85
        $region18: #{tpu_custom_call.1} parent=11 // pred_check_branch
          %236 = sbr.rel (%p234) target = $region20
        $region19: #{tpu_custom_call.1} parent=11 // pred_region
          _
        $region20: #{tpu_custom_call.1} parent=11 // pred_fallthru
          _
        // Predicated region
        $region21: #{tpu_custom_call.1} parent=11 // pred_check
          %p237 = pneg %p106
        $region22: #{tpu_custom_call.1} parent=11 // pred_check_branch
          %239 = sbr.rel (%p237) target = $region24
        $region23: #{tpu_custom_call.1} parent=11 // pred_region
          _
        $region24: #{tpu_custom_call.1} parent=11 // pred_fallthru
          _
        // Predicated region
        $region25: #{tpu_custom_call.1} parent=11 // pred_check
          %p240 = pneg %p127
        $region26: #{tpu_custom_call.1} parent=11 // pred_check_branch
          %242 = sbr.rel (%p240) target = $region28
        $region27: #{tpu_custom_call.1} parent=11 // pred_region
          _
        $region28: #{tpu_custom_call.1} parent=11 // pred_fallthru
          _
        // Predicated region
        $region29: #{tpu_custom_call.1} parent=11 // pred_check
          %p243 = pneg %p148
        $region30: #{tpu_custom_call.1} parent=11 // pred_check_branch
          %245 = sbr.rel (%p243) target = $region32
        $region31: #{tpu_custom_call.1} parent=11 // pred_region
          _
        $region32: #{tpu_custom_call.1} parent=11 // pred_fallthru
          _
        // Predicated region
        $region33: #{tpu_custom_call.1} parent=11 // pred_check
          %p246 = pneg %p169
        $region34: #{tpu_custom_call.1} parent=11 // pred_check_branch
          %248 = sbr.rel (%p246) target = $region36
        $region35: #{tpu_custom_call.1} parent=11 // pred_region
          _
        $region36: #{tpu_custom_call.1} parent=11 // pred_fallthru
          _
        // Predicated region
        $region37: #{tpu_custom_call.1} parent=11 // pred_check
          %p249 = pneg %p190
        $region38: #{tpu_custom_call.1} parent=11 // pred_check_branch
          %251 = sbr.rel (%p249) target = $region40
        $region39: #{tpu_custom_call.1} parent=11 // pred_region
          _
        $region40: #{tpu_custom_call.1} parent=11 // pred_fallthru
          _
      $region12: #{tpu_custom_call.1} parent=5 // pred_fallthru
        _
      %p252 = scmp.lt.s32.totalorder %s17, 2
      // Predicated region
      $region41: #{tpu_custom_call.1} parent=5 // pred_check
        %p253 = pneg %p252
      $region42: #{tpu_custom_call.1} parent=5 // pred_check_branch
        %255 = sbr.rel (%p253) target = $region44
      $region43: #{tpu_custom_call.1} parent=5 // pred_region
        // Predicated region
        $region45: #{tpu_custom_call.1} parent=43 // pred_check
          %p256 = pneg %p37
        $region46: #{tpu_custom_call.1} parent=43 // pred_check_branch
          %258 = sbr.rel (%p256) target = $region48
        $region47: #{tpu_custom_call.1} parent=43 // pred_region
          %p259 = scmp.lt.s32.totalorder %s17, 1
          %s260 = scalar_select %p259, %s17, 1
          %s261 = smul.addr %s260, 2
          %s262 = smul.addr %s261, 8
          %s263 = scalar_lea.vmem %s0, %s262
        $region48: #{tpu_custom_call.1} parent=43 // pred_fallthru
          _
      $region44: #{tpu_custom_call.1} parent=5 // pred_fallthru
        _
      %p264 = scmp.le.s32.totalorder 1, %s17
      %p265 = scmp.lt.s32.totalorder %s17, 3
      %p266 = pnand %p264, %p265
      %p267 = pneg %p266
      // Predicated region
      $region49: #{tpu_custom_call.1} parent=5 // pred_check
        _
      $region50: #{tpu_custom_call.1} parent=5 // pred_check_branch
        %269 = sbr.rel (%p266) target = $region52
      $region51: #{tpu_custom_call.1} parent=5 // pred_region
        %s270 = ssub.s32 %s17, 1
        %p271 = scmp.lt.s32.totalorder %s22, 1
        %s272 = scalar_select %p271, %s22, 1
        %s273 = smul.addr %s272, 2
        %s274 = smul.addr %s273, 8
        %s275 = scalar_lea.vmem %s0, %s274
        %p276 = pneg %p43
        %p277 = pneg %p40
        %p278 = pneg %p64
        %p279 = pneg %p61
        %p280 = pneg %p85
        %p281 = pneg %p82
        %p282 = pneg %p106
        %p283 = pneg %p103
        %p284 = pneg %p127
        %p285 = pneg %p124
        %p286 = pneg %p148
        %p287 = pneg %p145
        %p288 = pneg %p169
        %p289 = pneg %p166
        %p290 = pneg %p190
        %p291 = pneg %p187
        %p292 = pneg %p216
        %p293 = pneg %p213
        %s294 = sand.u32 %s203, 1
        %s295 = scalar_lea.sflag [#allocation3], %s294
        %s296 = sand.u32 %s203, 1
        %s297 = smul.addr %s296, 16
        %s298 = scalar_lea.vmem [#allocation2], %s297
        %p299 = scmp.lt.s32.totalorder %s22, 1
        %s300 = scalar_select %p299, %s22, 1
        %s301 = smul.addr %s300, 2
        %s302 = smul.addr %s301, 8
        %s303 = scalar_lea.vmem %s0, %s302
        %v304 = vld [vmem:[%s303] sm:$0xff]
        %v305 = vld [vmem:[%s303 + $0x8] sm:$0xff]
        %306 = vrot.lane.b32.xlu0 %v304, 17
        %v307 = vpop.permute.xlu0 %306
        %308 = vrot.lane.b32.xlu0 %v305, 17
        %v309 = vpop.permute.xlu0 %308
        %v310 = vlaneseq
        %v311 = vand.u32 %v310, 127
        %vm312 = vcmp.lt.s32.totalorder %v311, 17
        %v313 = vsel %vm312, %v307, %v309
        %v314 = vsel %vm312, %v309, %v307
        %v315 = vld [vmem:[%s2] sm:$0xff]
        %v316 = vld [vmem:[%s1] sm:$0x3]
        %v318 = vperm.slane %v316, 0
        %v319 = vperm.slane %v316, 1
        %v322 = vmul.f32 %v318, %v314
        %v323 = vmul.f32 %v319, %v313
        %325 = vset.pattern.permute.xlu0 0
        %326 = vperm.xlu0 %325, %v315
        %v327 = vpop.permute.xlu0 %326
        %v329 = vmul.f32 %v327, %v322
        %v330 = vmul.f32 %v327, %v323
        %v331 = vadd.f32 %v329, 0.0
        %v332 = vadd.f32 %v330, 0.0
        %333 = vrot.lane.b32.xlu0 %v304, 16
        %v334 = vpop.permute.xlu0 %333
        %335 = vrot.lane.b32.xlu0 %v305, 16
        %v336 = vpop.permute.xlu0 %335
        %vm337 = vcmp.lt.s32.totalorder %v311, 16
        %v338 = vsel %vm337, %v334, %v336
        %v339 = vsel %vm337, %v336, %v334
        %s340 = scalar_lea.vmem %s2, 8
        %v341 = vld [vmem:[%s340] sm:$0xff]
        %s342 = scalar_lea.vmem %s1, 2
        %v343 = vld [vmem:[%s342] sm:$0x3]
        %v345 = vperm.slane %v343, 0
        %v346 = vperm.slane %v343, 1
        %v349 = vmul.f32 %v345, %v339
        %v350 = vmul.f32 %v346, %v338
        %352 = vset.pattern.permute.xlu0 0
        %353 = vperm.xlu0 %352, %v341
        %v354 = vpop.permute.xlu0 %353
        %v356 = vmul.f32 %v354, %v349
        %v357 = vmul.f32 %v354, %v350
        %v358 = vadd.f32 %v331, %v356
        %v359 = vadd.f32 %v332, %v357
        %360 = vrot.lane.b32.xlu0 %v304, 15
        %v361 = vpop.permute.xlu0 %360
        %362 = vrot.lane.b32.xlu0 %v305, 15
        %v363 = vpop.permute.xlu0 %362
        %vm364 = vcmp.lt.s32.totalorder %v311, 15
        %v365 = vsel %vm364, %v361, %v363
        %v366 = vsel %vm364, %v363, %v361
        %s367 = scalar_lea.vmem %s2, 16
        %v368 = vld [vmem:[%s367] sm:$0xff]
        %s369 = scalar_lea.vmem %s1, 4
        %v370 = vld [vmem:[%s369] sm:$0x3]
        %v372 = vperm.slane %v370, 0
        %v373 = vperm.slane %v370, 1
        %v376 = vmul.f32 %v372, %v366
        %v377 = vmul.f32 %v373, %v365
        %379 = vset.pattern.permute.xlu0 0
        %380 = vperm.xlu0 %379, %v368
        %v381 = vpop.permute.xlu0 %380
        %v383 = vmul.f32 %v381, %v376
        %v384 = vmul.f32 %v381, %v377
        %v385 = vadd.f32 %v358, %v383
        %v386 = vadd.f32 %v359, %v384
        %387 = vrot.lane.b32.xlu0 %v304, 1
        %v388 = vpop.permute.xlu0 %387
        %389 = vrot.lane.b32.xlu0 %v305, 1
        %v390 = vpop.permute.xlu0 %389
        %vm391 = vcmp.lt.s32.totalorder %v311, 1
        %v392 = vsel %vm391, %v388, %v390
        %v393 = vsel %vm391, %v390, %v388
        %s394 = scalar_lea.vmem %s2, 24
        %v395 = vld [vmem:[%s394] sm:$0xff]
        %s396 = scalar_lea.vmem %s1, 6
        %v397 = vld [vmem:[%s396] sm:$0x3]
        %v399 = vperm.slane %v397, 0
        %v400 = vperm.slane %v397, 1
        %v403 = vmul.f32 %v399, %v393
        %v404 = vmul.f32 %v400, %v392
        %406 = vset.pattern.permute.xlu0 0
        %407 = vperm.xlu0 %406, %v395
        %v408 = vpop.permute.xlu0 %407
        %v410 = vmul.f32 %v408, %v403
        %v411 = vmul.f32 %v408, %v404
        %v412 = vadd.f32 %v385, %v410
        %v413 = vadd.f32 %v386, %v411
        %s414 = scalar_lea.vmem %s2, 32
        %v415 = vld [vmem:[%s414] sm:$0xff]
        %s416 = scalar_lea.vmem %s1, 8
        %v417 = vld [vmem:[%s416] sm:$0x3]
        %v419 = vperm.slane %v417, 0
        %v420 = vperm.slane %v417, 1
        %v423 = vmul.f32 %v419, %v304
        %v424 = vmul.f32 %v420, %v305
        %426 = vset.pattern.permute.xlu0 0
        %427 = vperm.xlu0 %426, %v415
        %v428 = vpop.permute.xlu0 %427
        %v430 = vmul.f32 %v428, %v423
        %v431 = vmul.f32 %v428, %v424
        %v432 = vadd.f32 %v412, %v430
        %v433 = vadd.f32 %v413, %v431
        %434 = vrot.lane.b32.xlu0 %v304, 127
        %v435 = vpop.permute.xlu0 %434
        %436 = vrot.lane.b32.xlu0 %v305, 127
        %v437 = vpop.permute.xlu0 %436
        %vm438 = vcmp.lt.s32.totalorder %v311, 127
        %v439 = vsel %vm438, %v435, %v437
        %v440 = vsel %vm438, %v437, %v435
        %s441 = scalar_lea.vmem %s2, 40
        %v442 = vld [vmem:[%s441] sm:$0xff]
        %s443 = scalar_lea.vmem %s1, 10
        %v444 = vld [vmem:[%s443] sm:$0x3]
        %v446 = vperm.slane %v444, 0
        %v447 = vperm.slane %v444, 1
        %v450 = vmul.f32 %v446, %v439
        %v451 = vmul.f32 %v447, %v440
        %453 = vset.pattern.permute.xlu0 0
        %454 = vperm.xlu0 %453, %v442
        %v455 = vpop.permute.xlu0 %454
        %v457 = vmul.f32 %v455, %v450
        %v458 = vmul.f32 %v455, %v451
        %v459 = vadd.f32 %v432, %v457
        %v460 = vadd.f32 %v433, %v458
        %461 = vrot.lane.b32.xlu0 %v304, 113
        %v462 = vpop.permute.xlu0 %461
        %463 = vrot.lane.b32.xlu0 %v305, 113
        %v464 = vpop.permute.xlu0 %463
        %vm465 = vcmp.lt.s32.totalorder %v311, 113
        %v466 = vsel %vm465, %v462, %v464
        %v467 = vsel %vm465, %v464, %v462
        %s468 = scalar_lea.vmem %s2, 48
        %v469 = vld [vmem:[%s468] sm:$0xff]
        %s470 = scalar_lea.vmem %s1, 12
        %v471 = vld [vmem:[%s470] sm:$0x3]
        %v473 = vperm.slane %v471, 0
        %v474 = vperm.slane %v471, 1
        %v477 = vmul.f32 %v473, %v466
        %v478 = vmul.f32 %v474, %v467
        %480 = vset.pattern.permute.xlu0 0
        %481 = vperm.xlu0 %480, %v469
        %v482 = vpop.permute.xlu0 %481
        %v484 = vmul.f32 %v482, %v477
        %v485 = vmul.f32 %v482, %v478
        %v486 = vadd.f32 %v459, %v484
        %v487 = vadd.f32 %v460, %v485
        %488 = vrot.lane.b32.xlu0 %v304, 112
        %v489 = vpop.permute.xlu0 %488
        %490 = vrot.lane.b32.xlu0 %v305, 112
        %v491 = vpop.permute.xlu0 %490
        %vm492 = vcmp.lt.s32.totalorder %v311, 112
        %v493 = vsel %vm492, %v489, %v491
        %v494 = vsel %vm492, %v491, %v489
        %s495 = scalar_lea.vmem %s2, 56
        %v496 = vld [vmem:[%s495] sm:$0xff]
        %s497 = scalar_lea.vmem %s1, 14
        %v498 = vld [vmem:[%s497] sm:$0x3]
        %v500 = vperm.slane %v498, 0
        %v501 = vperm.slane %v498, 1
        %v504 = vmul.f32 %v500, %v493
        %v505 = vmul.f32 %v501, %v494
        %507 = vset.pattern.permute.xlu0 0
        %508 = vperm.xlu0 %507, %v496
        %v509 = vpop.permute.xlu0 %508
        %v511 = vmul.f32 %v509, %v504
        %v512 = vmul.f32 %v509, %v505
        %v513 = vadd.f32 %v486, %v511
        %v514 = vadd.f32 %v487, %v512
        %515 = vrot.lane.b32.xlu0 %v304, 111
        %v516 = vpop.permute.xlu0 %515
        %517 = vrot.lane.b32.xlu0 %v305, 111
        %v518 = vpop.permute.xlu0 %517
        %vm519 = vcmp.lt.s32.totalorder %v311, 111
        %v520 = vsel %vm519, %v516, %v518
        %v521 = vsel %vm519, %v518, %v516
        %s522 = scalar_lea.vmem %s2, 64
        %v523 = vld [vmem:[%s522] sm:$0xff]
        %s524 = scalar_lea.vmem %s1, 16
        %v525 = vld [vmem:[%s524] sm:$0x3]
        %v527 = vperm.slane %v525, 0
        %v528 = vperm.slane %v525, 1
        %v531 = vmul.f32 %v527, %v520
        %v532 = vmul.f32 %v528, %v521
        %534 = vset.pattern.permute.xlu0 0
        %535 = vperm.xlu0 %534, %v523
        %v536 = vpop.permute.xlu0 %535
        %v538 = vmul.f32 %v536, %v531
        %v539 = vmul.f32 %v536, %v532
        %v540 = vadd.f32 %v513, %v538
        %v541 = vadd.f32 %v514, %v539
        %v542 = vld [vmem:[%s3] sm:$0xff]
        %544 = vset.pattern.permute.xlu0 0
        %545 = vperm.xlu0 %544, %v542
        %v546 = vpop.permute.xlu0 %545
        %v548 = vadd.f32 %v540, %v546
        %v549 = vadd.f32 %v541, %v546
        %v550 = vld [vmem:[%s4] sm:$0xff]
        %v551 = vld [vmem:[%s4 + $0x8] sm:$0xff]
        %v552 = vld [vmem:[%s5] sm:$0xff]
        %v553 = vld [vmem:[%s5 + $0x8] sm:$0xff]
        %555 = vset.pattern.permute.xlu0 0
        %556 = vperm.xlu0 %555, %v552
        %v557 = vpop.permute.xlu0 %556
        %560 = vset.pattern.permute.xlu0 0
        %561 = vperm.xlu0 %560, %v553
        %v562 = vpop.permute.xlu0 %561
        %vm564 = vcmask 64512
        %v566 = vsel %vm564, %v550, 0
        %v569 = vsel %vm564, %v551, 0
        %571 = vmatpush.msra.mxu0 0.0
        %572 = vmatpush.msra.mxu0 0.0
        %573 = vmatpush.msra.mxu0 0.0
        %574 = vmatpush.msra.mxu0 0.0
        %575 = vmatpush.msra.mxu0 0.0
        %576 = vmatpush.msra.mxu0 0.0
        %577 = vmatpush.msra.mxu0 0.0
        %578 = vmatpush.msra.mxu0 0.0
        %579 = vmatpush.msra.mxu0 0.0
        %580 = vmatpush.msra.mxu0 0.0
        %581 = vmatpush.msra.mxu0 0.0
        %582 = vmatpush.msra.mxu0 0.0
        %583 = vmatpush.msra.mxu0 0.0
        %584 = vmatpush.msra.mxu0 0.0
        %585 = vmatpush.msra.mxu0 0.0
        %586 = vmatpush.msra.mxu0 %v548
        %587 = vmatmul.f32.gmra.mxu0 %v566
        %v588 = vpop.f32.mrf.mxu0
        %v589 = vadd.f32 %v557, %v588
        %590 = vmatmul.f32.gmra.mxu0 %v569
        %v591 = vpop.f32.mrf.mxu0
        %v592 = vadd.f32 %v562, %v591
        %593 = vdwg.mxu0
        %594 = vmatpush.msra.mxu0 0.0
        %595 = vmatpush.msra.mxu0 0.0
        %596 = vmatpush.msra.mxu0 0.0
        %597 = vmatpush.msra.mxu0 0.0
        %598 = vmatpush.msra.mxu0 0.0
        %599 = vmatpush.msra.mxu0 0.0
        %600 = vmatpush.msra.mxu0 0.0
        %601 = vmatpush.msra.mxu0 0.0
        %602 = vmatpush.msra.mxu0 0.0
        %603 = vmatpush.msra.mxu0 0.0
        %604 = vmatpush.msra.mxu0 0.0
        %605 = vmatpush.msra.mxu0 0.0
        %606 = vmatpush.msra.mxu0 0.0
        %607 = vmatpush.msra.mxu0 0.0
        %608 = vmatpush.msra.mxu0 0.0
        %609 = vmatpush.msra.mxu0 %v549
        %610 = vmatmul.f32.gmra.mxu0 %v566
        %v611 = vpop.f32.mrf.mxu0
        %v612 = vadd.f32 %v557, %v611
        %613 = vmatmul.f32.gmra.mxu0 %v569
        %v614 = vpop.f32.mrf.mxu0
        %v615 = vadd.f32 %v562, %v614
        %616 = vdwg.mxu0
        %v617 = vmul.f32 %v589, 0.5
        %v618 = vmul.f32 %v612, 0.5
        %v619 = vmul.f32 %v592, 0.5
        %v620 = vmul.f32 %v615, 0.5
        %v621 = vmul.f32 %v589, %v589
        %v622 = vmul.f32 %v612, %v612
        %v623 = vmul.f32 %v592, %v592
        %v624 = vmul.f32 %v615, %v615
        %v625 = vmul.f32 %v621, %v589
        %v626 = vmul.f32 %v622, %v612
        %v627 = vmul.f32 %v623, %v592
        %v628 = vmul.f32 %v624, %v615
        %v629 = vmul.f32 %v625, 0.044715
        %v630 = vmul.f32 %v626, 0.044715
        %v631 = vmul.f32 %v627, 0.044715
        %v632 = vmul.f32 %v628, 0.044715
        %v633 = vadd.f32 %v589, %v629
        %v634 = vadd.f32 %v612, %v630
        %v635 = vadd.f32 %v592, %v631
        %v636 = vadd.f32 %v615, %v632
        %v637 = vmul.f32 %v633, 0.7978846
        %v638 = vmul.f32 %v634, 0.7978846
        %v639 = vmul.f32 %v635, 0.7978846
        %v640 = vmul.f32 %v636, 0.7978846
        %v641 = vtanh.pop %v637
        %v642 = vtanh.pop %v638
        %v643 = vtanh.pop %v639
        %v644 = vtanh.pop %v640
        %v645 = vadd.f32 %v641, 1.0
        %v646 = vadd.f32 %v642, 1.0
        %v647 = vadd.f32 %v643, 1.0
        %v648 = vadd.f32 %v644, 1.0
        %v649 = vmul.f32 %v617, %v645
        %v650 = vmul.f32 %v618, %v646
        %v651 = vmul.f32 %v619, %v647
        %v652 = vmul.f32 %v620, %v648
        %v653 = vld [vmem:[%s6] sm:$0xff]
        %v654 = vld [vmem:[%s7] sm:$0xff]
        %656 = vset.pattern.permute.xlu0 0
        %657 = vperm.xlu0 %656, %v654
        %v658 = vpop.permute.xlu0 %657
        %vm660 = vcmask 130048
        %v662 = vsel %vm660, %v653, 0
        %664 = vmatpush.msra.mxu0 0.0
        %665 = vmatpush.msra.mxu0 0.0
        %666 = vmatpush.msra.mxu0 0.0
        %667 = vmatpush.msra.mxu0 0.0
        %668 = vmatpush.msra.mxu0 0.0
        %669 = vmatpush.msra.mxu0 0.0
        %670 = vmatpush.msra.mxu0 0.0
        %671 = vmatpush.msra.mxu0 0.0
        %672 = vmatpush.msra.mxu0 0.0
        %673 = vmatpush.msra.mxu0 0.0
        %674 = vmatpush.msra.mxu0 0.0
        %675 = vmatpush.msra.mxu0 0.0
        %676 = vmatpush.msra.mxu0 0.0
        %677 = vmatpush.msra.mxu0 0.0
        %678 = vmatpush.msra.mxu0 %v651
        %679 = vmatpush.msra.mxu0 %v649
        %680 = vmatmul.f32.gmra.mxu0 %v662
        %v681 = vpop.f32.mrf.mxu0
        %v682 = vadd.f32 %v658, %v681
        %683 = vdwg.mxu0
        %684 = vmatpush.msra.mxu0 0.0
        %685 = vmatpush.msra.mxu0 0.0
        %686 = vmatpush.msra.mxu0 0.0
        %687 = vmatpush.msra.mxu0 0.0
        %688 = vmatpush.msra.mxu0 0.0
        %689 = vmatpush.msra.mxu0 0.0
        %690 = vmatpush.msra.mxu0 0.0
        %691 = vmatpush.msra.mxu0 0.0
        %692 = vmatpush.msra.mxu0 0.0
        %693 = vmatpush.msra.mxu0 0.0
        %694 = vmatpush.msra.mxu0 0.0
        %695 = vmatpush.msra.mxu0 0.0
        %696 = vmatpush.msra.mxu0 0.0
        %697 = vmatpush.msra.mxu0 0.0
        %698 = vmatpush.msra.mxu0 %v652
        %699 = vmatpush.msra.mxu0 %v650
        %700 = vmatmul.f32.gmra.mxu0 %v662
        %v701 = vpop.f32.mrf.mxu0
        %v702 = vadd.f32 %v658, %v701
        %703 = vdwg.mxu0
        %v704 = vadd.f32 %v304, %v682
        %v705 = vadd.f32 %v305, %v702
        %706 = vst [vmem:[%s298] sm:$0xff] %v704
        %707 = vst [vmem:[%s298 + $0x8] sm:$0xff] %v705
        %s708 = sand.u32 %s203, 1
        %s709 = scalar_lea.sflag [#allocation3], %s708
        %s710 = sand.u32 %s203, 1
        %s711 = smul.addr %s710, 16
        %s712 = scalar_lea.vmem [#allocation2], %s711
        // Predicated region
        $region53: #{tpu_custom_call.1} parent=51 // pred_check
          %p713 = pneg %p213
        $region54: #{tpu_custom_call.1} parent=51 // pred_check_branch
          %715 = sbr.rel (%p713) target = $region56
        $region55: #{tpu_custom_call.1} parent=51 // pred_region
          %717 = vsyncadd %s709, 0
          %s718 = smul.addr %s22, 2
          %s719 = smul.addr %s718, 8
          %s720 = scalar_lea.hbm %s8, %s719
          %s722 = sshll.u32 %s712, 4
          %s723 = int_to_ptr.vmem [resolvable:$true] %s722
          %s724 = sshll.u32 %s720, 4
          %s725 = int_to_ptr.hbm [resolvable:$true] %s724
          %727 = dma.vmem_to_hbm [thread:$0]  %s723, 256, %s725, %s709
        $region56: #{tpu_custom_call.1} parent=51 // pred_fallthru
          _
      $region52: #{tpu_custom_call.1} parent=5 // pred_fallthru
        _
      %p728 = scmp.le.s32.totalorder 2, %s17
      // Predicated region
      $region57: #{tpu_custom_call.1} parent=5 // pred_check
        %p729 = pneg %p728
      $region58: #{tpu_custom_call.1} parent=5 // pred_check_branch
        %731 = sbr.rel (%p729) target = $region60
      $region59: #{tpu_custom_call.1} parent=5 // pred_region
        %s732 = ssub.s32 %s17, 2
        // Predicated region
        $region61: #{tpu_custom_call.1} parent=59 // pred_check
          %p733 = pneg %p219
        $region62: #{tpu_custom_call.1} parent=59 // pred_check_branch
          %735 = sbr.rel (%p733) target = $region64
        $region63: #{tpu_custom_call.1} parent=59 // pred_region
          %s736 = sand.u32 %s204, 1
          %s737 = scalar_lea.sflag [#allocation3], %s736
          %s738 = sand.u32 %s204, 1
          %s739 = smul.addr %s738, 16
          %s740 = scalar_lea.vmem [#allocation2], %s739
          %742 = dma.done %s737, 256
        $region64: #{tpu_custom_call.1} parent=59 // pred_fallthru
          _
      $region60: #{tpu_custom_call.1} parent=5 // pred_fallthru
        _
    $region6: #{tpu_custom_call.1} parent=1 // loop_footer
      %s21 = sadd.s32 1, %s17
    $region7: #{tpu_custom_call.1} parent=1 // loop_footer_branch
      %16 = sbr.rel target = $region3
    $region8: #{tpu_custom_call.1} parent=1 // loop_exit
      _
    %743 = vsyncpa [#allocation3], 1
    %s744 = scalar_lea.sflag [#allocation3], 1
    %745 = vsyncpa %s744, 1

</llo_original>
